<compile_context>
chip_gen: v7x
topology: tpu7x:2x2x1
jax: 0.10.0
libtpu: 0.0.40
codegen_flags: <defaults>
</compile_context>

<pallas_src>
import jax
import jax.numpy as jnp
from jax import lax
from jax.experimental import pallas as pl
from jax.experimental.pallas import tpu as pltpu


# ------------------------------ JAX wrapper --------------------------------

def pretrained_forward(x_nchw, w_conv, b_conv, w_lin, b_lin):
    """Forward pass matching Pretrained.forward (need_refactor=True, softmax activation)."""
    B, Cin, H, W = x_nchw.shape
    F = w_conv.shape[0]
    NC = w_lin.shape[0]
    KH = KW = 3
    HW = H * W
    BHW = B * HW
    KC = KH * KW * Cin + 1            # +1 ones lane folds the conv bias into the matmul

    # ---- glue (pure layout, outside the kernel; bf16 up front to halve HBM bytes) ----
    # NCHW -> NHWC, zero-pad, im2col: (B*HW, KC) with [(kh,kw) major, cin minor] patches,
    # plus a trailing lane of ones for the bias.
    x_nhwc = jnp.transpose(x_nchw, (0, 2, 3, 1)).astype(jnp.bfloat16)
    xp = jnp.pad(x_nhwc, ((0, 0), (1, 1), (1, 1), (0, 0)))
    cols = [xp[:, kh:kh + H, kw:kw + W, :] for kh in range(KH) for kw in range(KW)]
    cols.append(jnp.ones((B, H, W, 1), jnp.bfloat16))                     # bias lane
    x_col = jnp.concatenate(cols, axis=-1).reshape(BHW, KC)               # (BHW, 37) bf16

    # conv weights (F, Cin, KH, KW) -> (36, F) in the same patch order, bias as row 36
    w36 = jnp.transpose(w_conv, (2, 3, 1, 0)).reshape(KH * KW * Cin, F)
    w_col = jnp.concatenate([w36, b_conv.reshape(1, F)], axis=0).astype(jnp.bfloat16)

    wl_t = jnp.transpose(w_lin).astype(jnp.bfloat16)                      # (F, NC)
    bl = b_lin.reshape(1, NC).astype(jnp.float32)                         # (1, NC)

    inv_hw = 1.0 / HW

    # ---- single fused Pallas kernel ----
    def fused_kernel(xc_ref, wc_ref, wl_ref, bl_ref, o_ref):
        # 1) conv 3x3 (bias folded into K) as one bf16 MXU matmul over all B*HW patch rows
        conv = jnp.dot(xc_ref[...], wc_ref[...], preferred_element_type=jnp.float32)
        conv = jnp.maximum(conv, 0.0)                                     # ReLU (f32)
        # 2) global average pool per image: sublane reduction (XLU), no pooling matmul
        pooled = jnp.sum(conv.reshape(B, HW, F), axis=1) * inv_hw         # (B, F) f32
        # 3) classifier head: Linear + softmax(dim=1), exact normalization
        logits = jnp.dot(pooled.astype(wl_ref.dtype), wl_ref[...],
                         preferred_element_type=jnp.float32) + bl_ref[...]
        m = jnp.max(logits, axis=1, keepdims=True)
        e = jnp.exp(logits - m)
        o_ref[...] = e / jnp.sum(e, axis=1, keepdims=True)

    vmem = pltpu.MemorySpace.VMEM
    probs = pl.pallas_call(
        fused_kernel,
        out_shape=jax.ShapeDtypeStruct((B, NC), jnp.float32),
        in_specs=[pl.BlockSpec(memory_space=vmem) for _ in range(4)],
        out_specs=pl.BlockSpec(memory_space=vmem),
    )(x_col, w_col, wl_t, bl)

    return probs


# --------------------------- pure-JAX reference ----------------------------

def reference_forward(x_nchw, w_conv, b_conv, w_lin, b_lin):
    conv = lax.conv_general_dilated(
        x_nchw, w_conv, window_strides=(1, 1), padding=((1, 1), (1, 1)),
        dimension_numbers=("NCHW", "OIHW", "NCHW"))
    conv = conv + b_conv[None, :, None, None]
    conv = jnp.maximum(conv, 0.0)
    feats = jnp.mean(conv, axis=(2, 3))                 # (B, F)
    logits = feats @ jnp.transpose(w_lin) + b_lin       # (B, NC)
    return jax.nn.softmax(logits, axis=1)


# --------------------------------- main -------------------------------------

if __name__ == "__main__":
    B, Cin, H, W = 2, 4, 16, 16
    F = 32            # backbone feature channels (model.last_linear.in_features)
    NC = 10           # num_classes

    key = jax.random.PRNGKey(0)
    k_x, k_wc, k_bc, k_wl, k_bl = jax.random.split(key, 5)

    x = jax.random.normal(k_x, (B, Cin, H, W), dtype=jnp.float32)
    w_conv = jax.random.normal(k_wc, (F, Cin, 3, 3), dtype=jnp.float32) * 0.1
    b_conv = jax.random.normal(k_bc, (F,), dtype=jnp.float32) * 0.1
    w_lin = jax.random.normal(k_wl, (NC, F), dtype=jnp.float32) * 0.1
    b_lin = jax.random.normal(k_bl, (NC,), dtype=jnp.float32) * 0.1

    out = jax.jit(pretrained_forward)(x, w_conv, b_conv, w_lin, b_lin)
    out = jax.block_until_ready(out)

    ref = reference_forward(x, w_conv, b_conv, w_lin, b_lin)
    assert out.shape == (B, NC)
    # bf16 matmul operands (intentional, inference-grade) -> loosened value tolerance
    assert jnp.allclose(out, ref, rtol=5e-2, atol=5e-3), (out, ref)
    # exact softmax normalization -> tight row-sum check
    assert jnp.allclose(jnp.sum(out, axis=1), 1.0, atol=1e-3)

    print("KERNEL_OK")
</pallas_src>

<mosaic_0001>
module attributes {stable_mosaic.version = 11 : i64} {
  func.func @fused_kernel(%arg0: memref<512x37xbf16, #tpu.memory_space<vmem>>, %arg1: memref<37x32xbf16, #tpu.memory_space<vmem>>, %arg2: memref<32x10xbf16, #tpu.memory_space<vmem>>, %arg3: memref<1x10xf32, #tpu.memory_space<vmem>>, %arg4: memref<2x10xf32, #tpu.memory_space<vmem>>) attributes {dimension_semantics = [], scalar_prefetch = 0 : i64, scratch_operands = 0 : i64, tpu.core_type = #tpu.core_type<tc>} {
    %c0 = arith.constant 0 : index
    %c0_0 = arith.constant 0 : index
    %0 = vector.load %arg0[%c0, %c0_0] : memref<512x37xbf16, #tpu.memory_space<vmem>>, vector<512x37xbf16>
    %c0_1 = arith.constant 0 : index
    %c0_2 = arith.constant 0 : index
    %1 = vector.load %arg1[%c0_1, %c0_2] : memref<37x32xbf16, #tpu.memory_space<vmem>>, vector<37x32xbf16>
    %cst = arith.constant dense<0.000000e+00> : vector<512x32xf32>
    %2 = tpu.matmul %0, %1, %cst {dimension_numbers = #tpu.dot_dimension_numbers<[1], [0], [0], [1], [0, 0, 1, 1], [], []>} : vector<512x37xbf16>, vector<37x32xbf16>, vector<512x32xf32> -> vector<512x32xf32>
    %cst_3 = arith.constant 0.000000e+00 : f32
    %3 = vector.broadcast %cst_3 : f32 to vector<512x32xf32>
    %4 = arith.maximumf %2, %3 : vector<512x32xf32>
    %5 = vector.shape_cast %4 : vector<512x32xf32> to vector<2x256x32xf32>
    %cst_4 = arith.constant dense<0.000000e+00> : vector<2x32xf32>
    %6 = vector.multi_reduction <add>, %5, %cst_4 [1] : vector<2x256x32xf32> to vector<2x32xf32>
    %cst_5 = arith.constant 3.906250e-03 : f32
    %7 = vector.broadcast %cst_5 : f32 to vector<2x32xf32>
    %8 = arith.mulf %6, %7 : vector<2x32xf32>
    %9 = arith.truncf %8 : vector<2x32xf32> to vector<2x32xbf16>
    %c0_6 = arith.constant 0 : index
    %c0_7 = arith.constant 0 : index
    %10 = vector.load %arg2[%c0_6, %c0_7] : memref<32x10xbf16, #tpu.memory_space<vmem>>, vector<32x10xbf16>
    %cst_8 = arith.constant dense<0.000000e+00> : vector<2x10xf32>
    %11 = tpu.matmul %9, %10, %cst_8 {dimension_numbers = #tpu.dot_dimension_numbers<[1], [0], [0], [1], [0, 0, 1, 1], [], []>} : vector<2x32xbf16>, vector<32x10xbf16>, vector<2x10xf32> -> vector<2x10xf32>
    %c0_9 = arith.constant 0 : index
    %c0_10 = arith.constant 0 : index
    %12 = vector.load %arg3[%c0_9, %c0_10] : memref<1x10xf32, #tpu.memory_space<vmem>>, vector<1x10xf32>
    %13 = vector.broadcast %12 : vector<1x10xf32> to vector<2x10xf32>
    %14 = arith.addf %11, %13 : vector<2x10xf32>
    %cst_11 = arith.constant dense<0xFF800000> : vector<2xf32>
    %15 = vector.multi_reduction <maximumf>, %14, %cst_11 [1] : vector<2x10xf32> to vector<2xf32>
    %16 = vector.shape_cast %15 : vector<2xf32> to vector<2x1xf32>
    %17 = vector.broadcast %16 : vector<2x1xf32> to vector<2x10xf32>
    %18 = arith.subf %14, %17 : vector<2x10xf32>
    %19 = math.exp %18 : vector<2x10xf32>
    %cst_12 = arith.constant dense<0.000000e+00> : vector<2xf32>
    %20 = vector.multi_reduction <add>, %19, %cst_12 [1] : vector<2x10xf32> to vector<2xf32>
    %21 = vector.shape_cast %20 : vector<2xf32> to vector<2x1xf32>
    %22 = vector.broadcast %21 : vector<2x1xf32> to vector<2x10xf32>
    %23 = arith.divf %19, %22 : vector<2x10xf32>
    %c0_13 = arith.constant 0 : index
    %c0_14 = arith.constant 0 : index
    %24 = vector.load %arg4[%c0_13, %c0_14] : memref<2x10xf32, #tpu.memory_space<vmem>>, vector<2x10xf32>
    tpu.vector_store %arg4[%c0_13, %c0_14], %23 {strides = array<i32>} : memref<2x10xf32, #tpu.memory_space<vmem>>, vector<2x10xf32>,
    return
  }
}

</mosaic_0001>

<llo_original>
// kernel: pretrained_forward.1
$region0: #{pretrained_forward.1}
  #allocation0 [shape = 'u32[]', space=smem, size = 0x4, offset = 0x4, fixed_abs, tag = 'smem constant byte address 0x4 - core index']
  #allocation1 [shape = 'u32[144,128]{1,0:T(1,128)}', space=vmem, size = 0x12000, scoped, tag = 'internal scratch']
  %s0 = inlined_call_operand.vmem [shape: bf16[512,37], index: 0, kind: input, shape index: {}]
  %s1 = inlined_call_operand.vmem [shape: bf16[37,32], index: 1, kind: input, shape index: {}]
  %s2 = inlined_call_operand.vmem [shape: bf16[32,10], index: 2, kind: input, shape index: {}]
  %s3 = inlined_call_operand.vmem [shape: f32[1,10], index: 3, kind: input, shape index: {}]
  %s4 = inlined_call_operand.hbm [shape: f32[2,10], index: 4, kind: output, shape index: {}]
  %s5 = sld [smem:[#allocation0]]
  $region26: #{pretrained_forward.1} parent=0
    _
  %s7 = ssub.s32 1, %s5
  %s8 = scalar_select 0, %s7, %s5
  $region1: #{pretrained_forward.1} parent=0
    #allocation2 [shape = 'u8[1024]{0}', space=vmem, size = 0x400, scoped, tag = 'output window, operand 0, single buffered']
    #allocation3 [shape = 's32[1]{0}', space=sflag, size = 0x4, scoped, tag = 'scoped memory for pretrained_forward.1']
    %9 = vsyncpa [#allocation3], 0
    // Predicated region
    $region2: #{pretrained_forward.1} parent=1 // pred_check
      _
    $region3: #{pretrained_forward.1} parent=1 // pred_check_branch
      %11 = sbr.rel (0) target = $region5
    $region4: #{pretrained_forward.1} parent=1 // pred_region
      _
    $region5: #{pretrained_forward.1} parent=1 // pred_fallthru
      _
    // Predicated region
    $region6: #{pretrained_forward.1} parent=1 // pred_check
      _
    $region7: #{pretrained_forward.1} parent=1 // pred_check_branch
      %13 = sbr.rel (0) target = $region9
    $region8: #{pretrained_forward.1} parent=1 // pred_region
      _
    $region9: #{pretrained_forward.1} parent=1 // pred_fallthru
      _
    // Predicated region
    $region10: #{pretrained_forward.1} parent=1 // pred_check
      _
    $region11: #{pretrained_forward.1} parent=1 // pred_check_branch
      %15 = sbr.rel (0) target = $region13
    $region12: #{pretrained_forward.1} parent=1 // pred_region
      _
    $region13: #{pretrained_forward.1} parent=1 // pred_fallthru
      _
    // Predicated region
    $region14: #{pretrained_forward.1} parent=1 // pred_check
      _
    $region15: #{pretrained_forward.1} parent=1 // pred_check_branch
      %17 = sbr.rel (0) target = $region17
    $region16: #{pretrained_forward.1} parent=1 // pred_region
      _
    $region17: #{pretrained_forward.1} parent=1 // pred_fallthru
      _
    %v19 = vld [vmem:[%s0] sm:$0xf]
    %v20 = vld [vmem:[%s0 + $0x4] sm:$0xf]
    %v21 = vld [vmem:[%s0 + $0x8] sm:$0xf]
    %v22 = vld [vmem:[%s0 + $0xc] sm:$0xf]
    %v23 = vld [vmem:[%s0 + $0x10] sm:$0xf]
    %v24 = vld [vmem:[%s0 + $0x14] sm:$0xf]
    %v25 = vld [vmem:[%s0 + $0x18] sm:$0xf]
    %v26 = vld [vmem:[%s0 + $0x1c] sm:$0xf]
    %v27 = vld [vmem:[%s0 + $0x20] sm:$0xf]
    %v28 = vld [vmem:[%s0 + $0x24] sm:$0xf]
    %v29 = vld [vmem:[%s0 + $0x28] sm:$0xf]
    %v30 = vld [vmem:[%s0 + $0x2c] sm:$0xf]
    %v31 = vld [vmem:[%s0 + $0x30] sm:$0xf]
    %v32 = vld [vmem:[%s0 + $0x34] sm:$0xf]
    %v33 = vld [vmem:[%s0 + $0x38] sm:$0xf]
    %v34 = vld [vmem:[%s0 + $0x3c] sm:$0xf]
    %v35 = vld [vmem:[%s0 + $0x40] sm:$0xf]
    %v36 = vld [vmem:[%s0 + $0x44] sm:$0xf]
    %v37 = vld [vmem:[%s0 + $0x48] sm:$0xf]
    %v38 = vld [vmem:[%s0 + $0x4c] sm:$0xf]
    %v39 = vld [vmem:[%s0 + $0x50] sm:$0xf]
    %v40 = vld [vmem:[%s0 + $0x54] sm:$0xf]
    %v41 = vld [vmem:[%s0 + $0x58] sm:$0xf]
    %v42 = vld [vmem:[%s0 + $0x5c] sm:$0xf]
    %v43 = vld [vmem:[%s0 + $0x60] sm:$0xf]
    %v44 = vld [vmem:[%s0 + $0x64] sm:$0xf]
    %v45 = vld [vmem:[%s0 + $0x68] sm:$0xf]
    %v46 = vld [vmem:[%s0 + $0x6c] sm:$0xf]
    %v47 = vld [vmem:[%s0 + $0x70] sm:$0xf]
    %v48 = vld [vmem:[%s0 + $0x74] sm:$0xf]
    %v49 = vld [vmem:[%s0 + $0x78] sm:$0xf]
    %v50 = vld [vmem:[%s0 + $0x7c] sm:$0xf]
    %v51 = vld [vmem:[%s0 + $0x80] sm:$0xf]
    %v52 = vld [vmem:[%s0 + $0x84] sm:$0xf]
    %v53 = vld [vmem:[%s0 + $0x88] sm:$0xf]
    %v54 = vld [vmem:[%s0 + $0x8c] sm:$0xf]
    %v55 = vld [vmem:[%s0 + $0x90] sm:$0xf]
    %v56 = vld [vmem:[%s0 + $0x94] sm:$0xf]
    %v57 = vld [vmem:[%s0 + $0x98] sm:$0xf]
    %v58 = vld [vmem:[%s0 + $0x9c] sm:$0xf]
    %v59 = vld [vmem:[%s0 + $0xa0] sm:$0xf]
    %v60 = vld [vmem:[%s0 + $0xa4] sm:$0xf]
    %v61 = vld [vmem:[%s0 + $0xa8] sm:$0xf]
    %v62 = vld [vmem:[%s0 + $0xac] sm:$0xf]
    %v63 = vld [vmem:[%s0 + $0xb0] sm:$0xf]
    %v64 = vld [vmem:[%s0 + $0xb4] sm:$0xf]
    %v65 = vld [vmem:[%s0 + $0xb8] sm:$0xf]
    %v66 = vld [vmem:[%s0 + $0xbc] sm:$0xf]
    %v67 = vld [vmem:[%s0 + $0xc0] sm:$0xf]
    %v68 = vld [vmem:[%s0 + $0xc4] sm:$0xf]
    %v69 = vld [vmem:[%s0 + $0xc8] sm:$0xf]
    %v70 = vld [vmem:[%s0 + $0xcc] sm:$0xf]
    %v71 = vld [vmem:[%s0 + $0xd0] sm:$0xf]
    %v72 = vld [vmem:[%s0 + $0xd4] sm:$0xf]
    %v73 = vld [vmem:[%s0 + $0xd8] sm:$0xf]
    %v74 = vld [vmem:[%s0 + $0xdc] sm:$0xf]
    %v75 = vld [vmem:[%s0 + $0xe0] sm:$0xf]
    %v76 = vld [vmem:[%s0 + $0xe4] sm:$0xf]
    %v77 = vld [vmem:[%s0 + $0xe8] sm:$0xf]
    %v78 = vld [vmem:[%s0 + $0xec] sm:$0xf]
    %v79 = vld [vmem:[%s0 + $0xf0] sm:$0xf]
    %v80 = vld [vmem:[%s0 + $0xf4] sm:$0xf]
    %v81 = vld [vmem:[%s0 + $0xf8] sm:$0xf]
    %v82 = vld [vmem:[%s0 + $0xfc] sm:$0xf]
    %v83 = vld [vmem:[%s1] sm:$0xf]
    %v84 = vld [vmem:[%s1 + $0x4] sm:$0xf]
    %v85 = vld [vmem:[%s1 + $0x8] sm:$0xf]
    %v86 = vld [vmem:[%s1 + $0xc] sm:$0xf]
    %v87 = vld [vmem:[%s1 + $0x10] sm:$0x7]
    %v152 = vunpack.c.l.b16 %v19
    %v153 = vunpack.c.l.b16 %v20
    %v154 = vunpack.c.l.b16 %v21
    %v155 = vunpack.c.l.b16 %v22
    %v156 = vunpack.c.l.b16 %v23
    %v157 = vunpack.c.l.b16 %v24
    %v158 = vunpack.c.l.b16 %v25
    %v159 = vunpack.c.l.b16 %v26
    %v160 = vunpack.c.l.b16 %v27
    %v161 = vunpack.c.l.b16 %v28
    %v162 = vunpack.c.l.b16 %v29
    %v163 = vunpack.c.l.b16 %v30
    %v164 = vunpack.c.l.b16 %v31
    %v165 = vunpack.c.l.b16 %v32
    %v166 = vunpack.c.l.b16 %v33
    %v167 = vunpack.c.l.b16 %v34
    %v168 = vunpack.c.l.b16 %v35
    %v169 = vunpack.c.l.b16 %v36
    %v170 = vunpack.c.l.b16 %v37
    %v171 = vunpack.c.l.b16 %v38
    %v172 = vunpack.c.l.b16 %v39
    %v173 = vunpack.c.l.b16 %v40
    %v174 = vunpack.c.l.b16 %v41
    %v175 = vunpack.c.l.b16 %v42
    %v176 = vunpack.c.l.b16 %v43
    %v177 = vunpack.c.l.b16 %v44
    %v178 = vunpack.c.l.b16 %v45
    %v179 = vunpack.c.l.b16 %v46
    %v180 = vunpack.c.l.b16 %v47
    %v181 = vunpack.c.l.b16 %v48
    %v182 = vunpack.c.l.b16 %v49
    %v183 = vunpack.c.l.b16 %v50
    %v184 = vunpack.c.l.b16 %v51
    %v185 = vunpack.c.l.b16 %v52
    %v186 = vunpack.c.l.b16 %v53
    %v187 = vunpack.c.l.b16 %v54
    %v188 = vunpack.c.l.b16 %v55
    %v189 = vunpack.c.l.b16 %v56
    %v190 = vunpack.c.l.b16 %v57
    %v191 = vunpack.c.l.b16 %v58
    %v192 = vunpack.c.l.b16 %v59
    %v193 = vunpack.c.l.b16 %v60
    %v194 = vunpack.c.l.b16 %v61
    %v195 = vunpack.c.l.b16 %v62
    %v196 = vunpack.c.l.b16 %v63
    %v197 = vunpack.c.l.b16 %v64
    %v198 = vunpack.c.l.b16 %v65
    %v199 = vunpack.c.l.b16 %v66
    %v200 = vunpack.c.l.b16 %v67
    %v201 = vunpack.c.l.b16 %v68
    %v202 = vunpack.c.l.b16 %v69
    %v203 = vunpack.c.l.b16 %v70
    %v204 = vunpack.c.l.b16 %v71
    %v205 = vunpack.c.l.b16 %v72
    %v206 = vunpack.c.l.b16 %v73
    %v207 = vunpack.c.l.b16 %v74
    %v208 = vunpack.c.l.b16 %v75
    %v209 = vunpack.c.l.b16 %v76
    %v210 = vunpack.c.l.b16 %v77
    %v211 = vunpack.c.l.b16 %v78
    %v212 = vunpack.c.l.b16 %v79
    %v213 = vunpack.c.l.b16 %v80
    %v214 = vunpack.c.l.b16 %v81
    %v215 = vunpack.c.l.b16 %v82
    %v216 = vpack.c.b16 %v153, %v152
    %v217 = vpack.c.b16 %v155, %v154
    %v218 = vpack.c.b16 %v157, %v156
    %v219 = vpack.c.b16 %v159, %v158
    %v220 = vpack.c.b16 %v161, %v160
    %v221 = vpack.c.b16 %v163, %v162
    %v222 = vpack.c.b16 %v165, %v164
    %v223 = vpack.c.b16 %v167, %v166
    %v224 = vpack.c.b16 %v169, %v168
    %v225 = vpack.c.b16 %v171, %v170
    %v226 = vpack.c.b16 %v173, %v172
    %v227 = vpack.c.b16 %v175, %v174
    %v228 = vpack.c.b16 %v177, %v176
    %v229 = vpack.c.b16 %v179, %v178
    %v230 = vpack.c.b16 %v181, %v180
    %v231 = vpack.c.b16 %v183, %v182
    %v232 = vpack.c.b16 %v185, %v184
    %v233 = vpack.c.b16 %v187, %v186
    %v234 = vpack.c.b16 %v189, %v188
    %v235 = vpack.c.b16 %v191, %v190
    %v236 = vpack.c.b16 %v193, %v192
    %v237 = vpack.c.b16 %v195, %v194
    %v238 = vpack.c.b16 %v197, %v196
    %v239 = vpack.c.b16 %v199, %v198
    %v240 = vpack.c.b16 %v201, %v200
    %v241 = vpack.c.b16 %v203, %v202
    %v242 = vpack.c.b16 %v205, %v204
    %v243 = vpack.c.b16 %v207, %v206
    %v244 = vpack.c.b16 %v209, %v208
    %v245 = vpack.c.b16 %v211, %v210
    %v246 = vpack.c.b16 %v213, %v212
    %v247 = vpack.c.b16 %v215, %v214
    %v253 = vunpack.c.l.b16 %v83
    %v254 = vunpack.c.l.b16 %v84
    %v255 = vunpack.c.l.b16 %v85
    %v256 = vunpack.c.l.b16 %v86
    %v257 = vunpack.c.l.b16 %v87
    %v258 = vpack.c.b16 %v254, %v253
    %v259 = vpack.c.b16 %v256, %v255
    %v260 = vpack.c.b16 %v257, %v257
    %vm263 = vcmask 302080
    %v265 = vsel %vm263, %v216, 0
    %v268 = vsel %vm263, %v217, 0
    %v271 = vsel %vm263, %v218, 0
    %v274 = vsel %vm263, %v219, 0
    %v277 = vsel %vm263, %v220, 0
    %v280 = vsel %vm263, %v221, 0
    %v283 = vsel %vm263, %v222, 0
    %v286 = vsel %vm263, %v223, 0
    %v289 = vsel %vm263, %v224, 0
    %v292 = vsel %vm263, %v225, 0
    %v295 = vsel %vm263, %v226, 0
    %v298 = vsel %vm263, %v227, 0
    %v301 = vsel %vm263, %v228, 0
    %v304 = vsel %vm263, %v229, 0
    %v307 = vsel %vm263, %v230, 0
    %v310 = vsel %vm263, %v231, 0
    %v313 = vsel %vm263, %v232, 0
    %v316 = vsel %vm263, %v233, 0
    %v319 = vsel %vm263, %v234, 0
    %v322 = vsel %vm263, %v235, 0
    %v325 = vsel %vm263, %v236, 0
    %v328 = vsel %vm263, %v237, 0
    %v331 = vsel %vm263, %v238, 0
    %v334 = vsel %vm263, %v239, 0
    %v337 = vsel %vm263, %v240, 0
    %v340 = vsel %vm263, %v241, 0
    %v343 = vsel %vm263, %v242, 0
    %v346 = vsel %vm263, %v243, 0
    %v349 = vsel %vm263, %v244, 0
    %v352 = vsel %vm263, %v245, 0
    %v355 = vsel %vm263, %v246, 0
    %v358 = vsel %vm263, %v247, 0
    %vm360 = vcmask 1041408
    %vm361 = vcmask 1042432
    %v362 = vsel %vm360, 4294967295, 65535
    %v363 = vsel %vm361, %v362, 0
    %v365 = vand.u32 %v260, %v363
    %367 = vmatprep.subr.bf16.mxu0 0
    %368 = vmatpush1.bf16.msra.mxu0 %v258
    %369 = vmatprep.subr.bf16.mxu0 0
    %370 = vmatpush1.bf16.msra.mxu0 %v259
    %371 = vmatprep.subr.bf16.mxu0 0
    %372 = vmatpush1.bf16.msra.mxu0 %v365
    %373 = vmatprep.subr.bf16.mxu0 0
    %374 = vmatpush1.bf16.msra.mxu0 0
    %375 = vmatprep.subr.bf16.mxu0 0
    %376 = vmatpush1.bf16.msra.mxu0 0
    %377 = vmatprep.subr.bf16.mxu0 0
    %378 = vmatpush1.bf16.msra.mxu0 0
    %379 = vmatprep.subr.bf16.mxu0 0
    %380 = vmatpush1.bf16.msra.mxu0 0
    %381 = vmatprep.subr.bf16.mxu0 0
    %382 = vmatpush1.bf16.msra.mxu0 0
    %383 = vmatprep.subr.bf16.mxu0 0
    %384 = vmatpush1.bf16.msra.mxu0 0
    %385 = vmatprep.subr.bf16.mxu0 0
    %386 = vmatpush1.bf16.msra.mxu0 0
    %387 = vmatprep.subr.bf16.mxu0 0
    %388 = vmatpush1.bf16.msra.mxu0 0
    %389 = vmatprep.subr.bf16.mxu0 0
    %390 = vmatpush1.bf16.msra.mxu0 0
    %391 = vmatprep.subr.bf16.mxu0 0
    %392 = vmatpush1.bf16.msra.mxu0 0
    %393 = vmatprep.subr.bf16.mxu0 0
    %394 = vmatpush1.bf16.msra.mxu0 0
    %395 = vmatprep.subr.bf16.mxu0 0
    %396 = vmatpush1.bf16.msra.mxu0 0
    %397 = vmatprep.subr.bf16.mxu0 0
    %398 = vmatpush1.bf16.msra.mxu0 0
    %399 = vmatprep.mubr.bf16.mxu0 0
    %400 = vmatmul.mubr.bf16.gmra.mrb[0].mxu0 %v265
    %v401 = vpop.f32.mrb[0].mxu0
    %v402 = vadd.f32 0.0, %v401
    %v403 = vpop.f32.mrb[0].mxu0
    %v404 = vpop.f32.mrb[0].mxu0
    %v405 = vadd.f32 0.0, %v404
    %v406 = vpop.f32.mrb[0].mxu0
    %407 = vmatprep.mubr.bf16.mxu0 0
    %408 = vmatmul.mubr.bf16.gmra.mrb[0].mxu0 %v268
    %v409 = vpop.f32.mrb[0].mxu0
    %v410 = vadd.f32 0.0, %v409
    %v411 = vpop.f32.mrb[0].mxu0
    %v412 = vpop.f32.mrb[0].mxu0
    %v413 = vadd.f32 0.0, %v412
    %v414 = vpop.f32.mrb[0].mxu0
    %415 = vmatprep.mubr.bf16.mxu0 0
    %416 = vmatmul.mubr.bf16.gmra.mrb[0].mxu0 %v271
    %v417 = vpop.f32.mrb[0].mxu0
    %v418 = vadd.f32 0.0, %v417
    %v419 = vpop.f32.mrb[0].mxu0
    %v420 = vpop.f32.mrb[0].mxu0
    %v421 = vadd.f32 0.0, %v420
    %v422 = vpop.f32.mrb[0].mxu0
    %423 = vmatprep.mubr.bf16.mxu0 0
    %424 = vmatmul.mubr.bf16.gmra.mrb[0].mxu0 %v274
    %v425 = vpop.f32.mrb[0].mxu0
    %v426 = vadd.f32 0.0, %v425
    %v427 = vpop.f32.mrb[0].mxu0
    %v428 = vpop.f32.mrb[0].mxu0
    %v429 = vadd.f32 0.0, %v428
    %v430 = vpop.f32.mrb[0].mxu0
    %431 = vmatprep.mubr.bf16.mxu0 0
    %432 = vmatmul.mubr.bf16.gmra.mrb[0].mxu0 %v277
    %v433 = vpop.f32.mrb[0].mxu0
    %v434 = vadd.f32 0.0, %v433
    %v435 = vpop.f32.mrb[0].mxu0
    %v436 = vpop.f32.mrb[0].mxu0
    %v437 = vadd.f32 0.0, %v436
    %v438 = vpop.f32.mrb[0].mxu0
    %439 = vmatprep.mubr.bf16.mxu0 0
    %440 = vmatmul.mubr.bf16.gmra.mrb[0].mxu0 %v280
    %v441 = vpop.f32.mrb[0].mxu0
    %v442 = vadd.f32 0.0, %v441
    %v443 = vpop.f32.mrb[0].mxu0
    %v444 = vpop.f32.mrb[0].mxu0
    %v445 = vadd.f32 0.0, %v444
    %v446 = vpop.f32.mrb[0].mxu0
    %447 = vmatprep.mubr.bf16.mxu0 0
    %448 = vmatmul.mubr.bf16.gmra.mrb[0].mxu0 %v283
    %v449 = vpop.f32.mrb[0].mxu0
    %v450 = vadd.f32 0.0, %v449
    %v451 = vpop.f32.mrb[0].mxu0
    %v452 = vpop.f32.mrb[0].mxu0
    %v453 = vadd.f32 0.0, %v452
    %v454 = vpop.f32.mrb[0].mxu0
    %455 = vmatprep.mubr.bf16.mxu0 0
    %456 = vmatmul.mubr.bf16.gmra.mrb[0].mxu0 %v286
    %v457 = vpop.f32.mrb[0].mxu0
    %v458 = vadd.f32 0.0, %v457
    %v459 = vpop.f32.mrb[0].mxu0
    %v460 = vpop.f32.mrb[0].mxu0
    %v461 = vadd.f32 0.0, %v460
    %v462 = vpop.f32.mrb[0].mxu0
    %463 = vmatprep.mubr.bf16.mxu0 0
    %464 = vmatmul.mubr.bf16.gmra.mrb[0].mxu0 %v289
    %v465 = vpop.f32.mrb[0].mxu0
    %v466 = vadd.f32 0.0, %v465
    %v467 = vpop.f32.mrb[0].mxu0
    %v468 = vpop.f32.mrb[0].mxu0
    %v469 = vadd.f32 0.0, %v468
    %v470 = vpop.f32.mrb[0].mxu0
    %471 = vmatprep.mubr.bf16.mxu0 0
    %472 = vmatmul.mubr.bf16.gmra.mrb[0].mxu0 %v292
    %v473 = vpop.f32.mrb[0].mxu0
    %v474 = vadd.f32 0.0, %v473
    %v475 = vpop.f32.mrb[0].mxu0
    %v476 = vpop.f32.mrb[0].mxu0
    %v477 = vadd.f32 0.0, %v476
    %v478 = vpop.f32.mrb[0].mxu0
    %479 = vmatprep.mubr.bf16.mxu0 0
    %480 = vmatmul.mubr.bf16.gmra.mrb[0].mxu0 %v295
    %v481 = vpop.f32.mrb[0].mxu0
    %v482 = vadd.f32 0.0, %v481
    %v483 = vpop.f32.mrb[0].mxu0
    %v484 = vpop.f32.mrb[0].mxu0
    %v485 = vadd.f32 0.0, %v484
    %v486 = vpop.f32.mrb[0].mxu0
    %487 = vmatprep.mubr.bf16.mxu0 0
    %488 = vmatmul.mubr.bf16.gmra.mrb[0].mxu0 %v298
    %v489 = vpop.f32.mrb[0].mxu0
    %v490 = vadd.f32 0.0, %v489
    %v491 = vpop.f32.mrb[0].mxu0
    %v492 = vpop.f32.mrb[0].mxu0
    %v493 = vadd.f32 0.0, %v492
    %v494 = vpop.f32.mrb[0].mxu0
    %495 = vmatprep.mubr.bf16.mxu0 0
    %496 = vmatmul.mubr.bf16.gmra.mrb[0].mxu0 %v301
    %v497 = vpop.f32.mrb[0].mxu0
    %v498 = vadd.f32 0.0, %v497
    %v499 = vpop.f32.mrb[0].mxu0
    %v500 = vpop.f32.mrb[0].mxu0
    %v501 = vadd.f32 0.0, %v500
    %v502 = vpop.f32.mrb[0].mxu0
    %503 = vmatprep.mubr.bf16.mxu0 0
    %504 = vmatmul.mubr.bf16.gmra.mrb[0].mxu0 %v304
    %v505 = vpop.f32.mrb[0].mxu0
    %v506 = vadd.f32 0.0, %v505
    %v507 = vpop.f32.mrb[0].mxu0
    %v508 = vpop.f32.mrb[0].mxu0
    %v509 = vadd.f32 0.0, %v508
    %v510 = vpop.f32.mrb[0].mxu0
    %511 = vmatprep.mubr.bf16.mxu0 0
    %512 = vmatmul.mubr.bf16.gmra.mrb[0].mxu0 %v307
    %v513 = vpop.f32.mrb[0].mxu0
    %v514 = vadd.f32 0.0, %v513
    %v515 = vpop.f32.mrb[0].mxu0
    %v516 = vpop.f32.mrb[0].mxu0
    %v517 = vadd.f32 0.0, %v516
    %v518 = vpop.f32.mrb[0].mxu0
    %519 = vmatprep.mubr.bf16.mxu0 0
    %520 = vmatmul.mubr.bf16.gmra.mrb[0].mxu0 %v310
    %v521 = vpop.f32.mrb[0].mxu0
    %v522 = vadd.f32 0.0, %v521
    %v523 = vpop.f32.mrb[0].mxu0
    %v524 = vpop.f32.mrb[0].mxu0
    %v525 = vadd.f32 0.0, %v524
    %v526 = vpop.f32.mrb[0].mxu0
    %527 = vmatprep.mubr.bf16.mxu0 0
    %528 = vmatmul.mubr.bf16.gmra.mrb[0].mxu0 %v313
    %v529 = vpop.f32.mrb[0].mxu0
    %v530 = vadd.f32 0.0, %v529
    %v531 = vpop.f32.mrb[0].mxu0
    %v532 = vpop.f32.mrb[0].mxu0
    %v533 = vadd.f32 0.0, %v532
    %v534 = vpop.f32.mrb[0].mxu0
    %535 = vmatprep.mubr.bf16.mxu0 0
    %536 = vmatmul.mubr.bf16.gmra.mrb[0].mxu0 %v316
    %v537 = vpop.f32.mrb[0].mxu0
    %v538 = vadd.f32 0.0, %v537
    %v539 = vpop.f32.mrb[0].mxu0
    %v540 = vpop.f32.mrb[0].mxu0
    %v541 = vadd.f32 0.0, %v540
    %v542 = vpop.f32.mrb[0].mxu0
    %543 = vmatprep.mubr.bf16.mxu0 0
    %544 = vmatmul.mubr.bf16.gmra.mrb[0].mxu0 %v319
    %v545 = vpop.f32.mrb[0].mxu0
    %v546 = vadd.f32 0.0, %v545
    %v547 = vpop.f32.mrb[0].mxu0
    %v548 = vpop.f32.mrb[0].mxu0
    %v549 = vadd.f32 0.0, %v548
    %v550 = vpop.f32.mrb[0].mxu0
    %551 = vmatprep.mubr.bf16.mxu0 0
    %552 = vmatmul.mubr.bf16.gmra.mrb[0].mxu0 %v322
    %v553 = vpop.f32.mrb[0].mxu0
    %v554 = vadd.f32 0.0, %v553
    %v555 = vpop.f32.mrb[0].mxu0
    %v556 = vpop.f32.mrb[0].mxu0
    %v557 = vadd.f32 0.0, %v556
    %v558 = vpop.f32.mrb[0].mxu0
    %559 = vmatprep.mubr.bf16.mxu0 0
    %560 = vmatmul.mubr.bf16.gmra.mrb[0].mxu0 %v325
    %v561 = vpop.f32.mrb[0].mxu0
    %v562 = vadd.f32 0.0, %v561
    %v563 = vpop.f32.mrb[0].mxu0
    %v564 = vpop.f32.mrb[0].mxu0
    %v565 = vadd.f32 0.0, %v564
    %v566 = vpop.f32.mrb[0].mxu0
    %567 = vmatprep.mubr.bf16.mxu0 0
    %568 = vmatmul.mubr.bf16.gmra.mrb[0].mxu0 %v328
    %v569 = vpop.f32.mrb[0].mxu0
    %v570 = vadd.f32 0.0, %v569
    %v571 = vpop.f32.mrb[0].mxu0
    %v572 = vpop.f32.mrb[0].mxu0
    %v573 = vadd.f32 0.0, %v572
    %v574 = vpop.f32.mrb[0].mxu0
    %575 = vmatprep.mubr.bf16.mxu0 0
    %576 = vmatmul.mubr.bf16.gmra.mrb[0].mxu0 %v331
    %v577 = vpop.f32.mrb[0].mxu0
    %v578 = vadd.f32 0.0, %v577
    %v579 = vpop.f32.mrb[0].mxu0
    %v580 = vpop.f32.mrb[0].mxu0
    %v581 = vadd.f32 0.0, %v580
    %v582 = vpop.f32.mrb[0].mxu0
    %583 = vmatprep.mubr.bf16.mxu0 0
    %584 = vmatmul.mubr.bf16.gmra.mrb[0].mxu0 %v334
    %v585 = vpop.f32.mrb[0].mxu0
    %v586 = vadd.f32 0.0, %v585
    %v587 = vpop.f32.mrb[0].mxu0
    %v588 = vpop.f32.mrb[0].mxu0
    %v589 = vadd.f32 0.0, %v588
    %v590 = vpop.f32.mrb[0].mxu0
    %591 = vmatprep.mubr.bf16.mxu0 0
    %592 = vmatmul.mubr.bf16.gmra.mrb[0].mxu0 %v337
    %v593 = vpop.f32.mrb[0].mxu0
    %v594 = vadd.f32 0.0, %v593
    %v595 = vpop.f32.mrb[0].mxu0
    %v596 = vpop.f32.mrb[0].mxu0
    %v597 = vadd.f32 0.0, %v596
    %v598 = vpop.f32.mrb[0].mxu0
    %599 = vmatprep.mubr.bf16.mxu0 0
    %600 = vmatmul.mubr.bf16.gmra.mrb[0].mxu0 %v340
    %v601 = vpop.f32.mrb[0].mxu0
    %v602 = vadd.f32 0.0, %v601
    %v603 = vpop.f32.mrb[0].mxu0
    %v604 = vpop.f32.mrb[0].mxu0
    %v605 = vadd.f32 0.0, %v604
    %v606 = vpop.f32.mrb[0].mxu0
    %607 = vmatprep.mubr.bf16.mxu0 0
    %608 = vmatmul.mubr.bf16.gmra.mrb[0].mxu0 %v343
    %v609 = vpop.f32.mrb[0].mxu0
    %v610 = vadd.f32 0.0, %v609
    %v611 = vpop.f32.mrb[0].mxu0
    %v612 = vpop.f32.mrb[0].mxu0
    %v613 = vadd.f32 0.0, %v612
    %v614 = vpop.f32.mrb[0].mxu0
    %615 = vmatprep.mubr.bf16.mxu0 0
    %616 = vmatmul.mubr.bf16.gmra.mrb[0].mxu0 %v346
    %v617 = vpop.f32.mrb[0].mxu0
    %v618 = vadd.f32 0.0, %v617
    %v619 = vpop.f32.mrb[0].mxu0
    %v620 = vpop.f32.mrb[0].mxu0
    %v621 = vadd.f32 0.0, %v620
    %v622 = vpop.f32.mrb[0].mxu0
    %623 = vmatprep.mubr.bf16.mxu0 0
    %624 = vmatmul.mubr.bf16.gmra.mrb[0].mxu0 %v349
    %v625 = vpop.f32.mrb[0].mxu0
    %v626 = vadd.f32 0.0, %v625
    %v627 = vpop.f32.mrb[0].mxu0
    %v628 = vpop.f32.mrb[0].mxu0
    %v629 = vadd.f32 0.0, %v628
    %v630 = vpop.f32.mrb[0].mxu0
    %631 = vmatprep.mubr.bf16.mxu0 0
    %632 = vmatmul.mubr.bf16.gmra.mrb[0].mxu0 %v352
    %v633 = vpop.f32.mrb[0].mxu0
    %v634 = vadd.f32 0.0, %v633
    %v635 = vpop.f32.mrb[0].mxu0
    %v636 = vpop.f32.mrb[0].mxu0
    %v637 = vadd.f32 0.0, %v636
    %v638 = vpop.f32.mrb[0].mxu0
    %639 = vmatprep.mubr.bf16.mxu0 0
    %640 = vmatmul.mubr.bf16.gmra.mrb[0].mxu0 %v355
    %v641 = vpop.f32.mrb[0].mxu0
    %v642 = vadd.f32 0.0, %v641
    %v643 = vpop.f32.mrb[0].mxu0
    %v644 = vpop.f32.mrb[0].mxu0
    %v645 = vadd.f32 0.0, %v644
    %v646 = vpop.f32.mrb[0].mxu0
    %647 = vmatprep.mubr.bf16.mxu0 0
    %648 = vmatmul.mubr.bf16.gmra.mrb[0].mxu0 %v358
    %v649 = vpop.f32.mrb[0].mxu0
    %v650 = vadd.f32 0.0, %v649
    %v651 = vpop.f32.mrb[0].mxu0
    %v652 = vpop.f32.mrb[0].mxu0
    %v653 = vadd.f32 0.0, %v652
    %v654 = vpop.f32.mrb[0].mxu0
    %655 = vdwg.mxu0
    %v656 = vmax.f32 %v402, 0.0
    %v657 = vmax.f32 %v405, 0.0
    %v658 = vmax.f32 %v410, 0.0
    %v659 = vmax.f32 %v413, 0.0
    %v660 = vmax.f32 %v418, 0.0
    %v661 = vmax.f32 %v421, 0.0
    %v662 = vmax.f32 %v426, 0.0
    %v663 = vmax.f32 %v429, 0.0
    %v664 = vmax.f32 %v434, 0.0
    %v665 = vmax.f32 %v437, 0.0
    %v666 = vmax.f32 %v442, 0.0
    %v667 = vmax.f32 %v445, 0.0
    %v668 = vmax.f32 %v450, 0.0
    %v669 = vmax.f32 %v453, 0.0
    %v670 = vmax.f32 %v458, 0.0
    %v671 = vmax.f32 %v461, 0.0
    %v672 = vmax.f32 %v466, 0.0
    %v673 = vmax.f32 %v469, 0.0
    %v674 = vmax.f32 %v474, 0.0
    %v675 = vmax.f32 %v477, 0.0
    %v676 = vmax.f32 %v482, 0.0
    %v677 = vmax.f32 %v485, 0.0
    %v678 = vmax.f32 %v490, 0.0
    %v679 = vmax.f32 %v493, 0.0
    %v680 = vmax.f32 %v498, 0.0
    %v681 = vmax.f32 %v501, 0.0
    %v682 = vmax.f32 %v506, 0.0
    %v683 = vmax.f32 %v509, 0.0
    %v684 = vmax.f32 %v514, 0.0
    %v685 = vmax.f32 %v517, 0.0
    %v686 = vmax.f32 %v522, 0.0
    %v687 = vmax.f32 %v525, 0.0
    %v688 = vmax.f32 %v530, 0.0
    %v689 = vmax.f32 %v533, 0.0
    %v690 = vmax.f32 %v538, 0.0
    %v691 = vmax.f32 %v541, 0.0
    %v692 = vmax.f32 %v546, 0.0
    %v693 = vmax.f32 %v549, 0.0
    %v694 = vmax.f32 %v554, 0.0
    %v695 = vmax.f32 %v557, 0.0
    %v696 = vmax.f32 %v562, 0.0
    %v697 = vmax.f32 %v565, 0.0
    %v698 = vmax.f32 %v570, 0.0
    %v699 = vmax.f32 %v573, 0.0
    %v700 = vmax.f32 %v578, 0.0
    %v701 = vmax.f32 %v581, 0.0
    %v702 = vmax.f32 %v586, 0.0
    %v703 = vmax.f32 %v589, 0.0
    %v704 = vmax.f32 %v594, 0.0
    %v705 = vmax.f32 %v597, 0.0
    %v706 = vmax.f32 %v602, 0.0
    %v707 = vmax.f32 %v605, 0.0
    %v708 = vmax.f32 %v610, 0.0
    %v709 = vmax.f32 %v613, 0.0
    %v710 = vmax.f32 %v618, 0.0
    %v711 = vmax.f32 %v621, 0.0
    %v712 = vmax.f32 %v626, 0.0
    %v713 = vmax.f32 %v629, 0.0
    %v714 = vmax.f32 %v634, 0.0
    %v715 = vmax.f32 %v637, 0.0
    %v716 = vmax.f32 %v642, 0.0
    %v717 = vmax.f32 %v645, 0.0
    %v718 = vmax.f32 %v650, 0.0
    %v719 = vmax.f32 %v653, 0.0
    %vm720 = vcmask 261120
    %v721 = vsel %vm720, %v656, 0.0
    %v722 = vsel %vm720, %v657, 0.0
    %v723 = vadd.f32 %v721, %v722
    %v724 = vsel %vm720, %v658, 0.0
    %v725 = vadd.f32 %v723, %v724
    %v726 = vsel %vm720, %v659, 0.0
    %v727 = vadd.f32 %v725, %v726
    %v728 = vsel %vm720, %v660, 0.0
    %v729 = vadd.f32 %v727, %v728
    %v730 = vsel %vm720, %v661, 0.0
    %v731 = vadd.f32 %v729, %v730
    %v732 = vsel %vm720, %v662, 0.0
    %v733 = vadd.f32 %v731, %v732
    %v734 = vsel %vm720, %v663, 0.0
    %v735 = vadd.f32 %v733, %v734
    %v736 = vsel %vm720, %v664, 0.0
    %v737 = vadd.f32 %v735, %v736
    %v738 = vsel %vm720, %v665, 0.0
    %v739 = vadd.f32 %v737, %v738
    %v740 = vsel %vm720, %v666, 0.0
    %v741 = vadd.f32 %v739, %v740
    %v742 = vsel %vm720, %v667, 0.0
    %v743 = vadd.f32 %v741, %v742
    %v744 = vsel %vm720, %v668, 0.0
    %v745 = vadd.f32 %v743, %v744
    %v746 = vsel %vm720, %v669, 0.0
    %v747 = vadd.f32 %v745, %v746
    %v748 = vsel %vm720, %v670, 0.0
    %v749 = vadd.f32 %v747, %v748
    %v750 = vsel %vm720, %v671, 0.0
    %v751 = vadd.f32 %v749, %v750
    %v752 = vsel %vm720, %v672, 0.0
    %v753 = vadd.f32 %v751, %v752
    %v754 = vsel %vm720, %v673, 0.0
    %v755 = vadd.f32 %v753, %v754
    %v756 = vsel %vm720, %v674, 0.0
    %v757 = vadd.f32 %v755, %v756
    %v758 = vsel %vm720, %v675, 0.0
    %v759 = vadd.f32 %v757, %v758
    %v760 = vsel %vm720, %v676, 0.0
    %v761 = vadd.f32 %v759, %v760
    %v762 = vsel %vm720, %v677, 0.0
    %v763 = vadd.f32 %v761, %v762
    %v764 = vsel %vm720, %v678, 0.0
    %v765 = vadd.f32 %v763, %v764
    %v766 = vsel %vm720, %v679, 0.0
    %v767 = vadd.f32 %v765, %v766
    %v768 = vsel %vm720, %v680, 0.0
    %v769 = vadd.f32 %v767, %v768
    %v770 = vsel %vm720, %v681, 0.0
    %v771 = vadd.f32 %v769, %v770
    %v772 = vsel %vm720, %v682, 0.0
    %v773 = vadd.f32 %v771, %v772
    %v774 = vsel %vm720, %v683, 0.0
    %v775 = vadd.f32 %v773, %v774
    %v776 = vsel %vm720, %v684, 0.0
    %v777 = vadd.f32 %v775, %v776
    %v778 = vsel %vm720, %v685, 0.0
    %v779 = vadd.f32 %v777, %v778
    %v780 = vsel %vm720, %v686, 0.0
    %v781 = vadd.f32 %v779, %v780
    %v782 = vsel %vm720, %v687, 0.0
    %v783 = vadd.f32 %v781, %v782
    %v784 = vrot.slane %v783, 4
    %v785 = vadd.f32 %v783, %v784
    %v786 = vrot.slane %v785, 2
    %v787 = vadd.f32 %v785, %v786
    %v788 = vrot.slane %v787, 1
    %v789 = vadd.f32 %v787, %v788
    %v790 = vsel %vm720, %v688, 0.0
    %v791 = vsel %vm720, %v689, 0.0
    %v792 = vadd.f32 %v790, %v791
    %v793 = vsel %vm720, %v690, 0.0
    %v794 = vadd.f32 %v792, %v793
    %v795 = vsel %vm720, %v691, 0.0
    %v796 = vadd.f32 %v794, %v795
    %v797 = vsel %vm720, %v692, 0.0
    %v798 = vadd.f32 %v796, %v797
    %v799 = vsel %vm720, %v693, 0.0
    %v800 = vadd.f32 %v798, %v799
    %v801 = vsel %vm720, %v694, 0.0
    %v802 = vadd.f32 %v800, %v801
    %v803 = vsel %vm720, %v695, 0.0
    %v804 = vadd.f32 %v802, %v803
    %v805 = vsel %vm720, %v696, 0.0
    %v806 = vadd.f32 %v804, %v805
    %v807 = vsel %vm720, %v697, 0.0
    %v808 = vadd.f32 %v806, %v807
    %v809 = vsel %vm720, %v698, 0.0
    %v810 = vadd.f32 %v808, %v809
    %v811 = vsel %vm720, %v699, 0.0
    %v812 = vadd.f32 %v810, %v811
    %v813 = vsel %vm720, %v700, 0.0
    %v814 = vadd.f32 %v812, %v813
    %v815 = vsel %vm720, %v701, 0.0
    %v816 = vadd.f32 %v814, %v815
    %v817 = vsel %vm720, %v702, 0.0
    %v818 = vadd.f32 %v816, %v817
    %v819 = vsel %vm720, %v703, 0.0
    %v820 = vadd.f32 %v818, %v819
    %v821 = vsel %vm720, %v704, 0.0
    %v822 = vadd.f32 %v820, %v821
    %v823 = vsel %vm720, %v705, 0.0
    %v824 = vadd.f32 %v822, %v823
    %v825 = vsel %vm720, %v706, 0.0
    %v826 = vadd.f32 %v824, %v825
    %v827 = vsel %vm720, %v707, 0.0
    %v828 = vadd.f32 %v826, %v827
    %v829 = vsel %vm720, %v708, 0.0
    %v830 = vadd.f32 %v828, %v829
    %v831 = vsel %vm720, %v709, 0.0
    %v832 = vadd.f32 %v830, %v831
    %v833 = vsel %vm720, %v710, 0.0
    %v834 = vadd.f32 %v832, %v833
    %v835 = vsel %vm720, %v711, 0.0
    %v836 = vadd.f32 %v834, %v835
    %v837 = vsel %vm720, %v712, 0.0
    %v838 = vadd.f32 %v836, %v837
    %v839 = vsel %vm720, %v713, 0.0
    %v840 = vadd.f32 %v838, %v839
    %v841 = vsel %vm720, %v714, 0.0
    %v842 = vadd.f32 %v840, %v841
    %v843 = vsel %vm720, %v715, 0.0
    %v844 = vadd.f32 %v842, %v843
    %v845 = vsel %vm720, %v716, 0.0
    %v846 = vadd.f32 %v844, %v845
    %v847 = vsel %vm720, %v717, 0.0
    %v848 = vadd.f32 %v846, %v847
    %v849 = vsel %vm720, %v718, 0.0
    %v850 = vadd.f32 %v848, %v849
    %v851 = vsel %vm720, %v719, 0.0
    %v852 = vadd.f32 %v850, %v851
    %v853 = vrot.slane %v852, 4
    %v854 = vadd.f32 %v852, %v853
    %v855 = vrot.slane %v854, 2
    %v856 = vadd.f32 %v854, %v855
    %v857 = vrot.slane %v856, 1
    %v858 = vadd.f32 %v856, %v857
    %v859 = vmul.f32 %v789, 0.00390625
    %v860 = vmul.f32 %v858, 0.00390625
    %v861 = vpack.c.bf16 %v859, %v859
    %v862 = vpack.c.bf16 %v860, %v860
    %v863 = vld [vmem:[%s2] sm:$0xf]
    %v864 = vld [vmem:[%s2 + $0x4] sm:$0xf]
    %v865 = vld [vmem:[%s2 + $0x8] sm:$0xf]
    %v866 = vld [vmem:[%s2 + $0xc] sm:$0xf]
    %v867 = vld [vmem:[%s3] sm:$0x1]
    %v869 = vlaneseq
    %v870 = vshrl.u32 %v869, 7
    %v871 = vsub.s32 0, %v870
    %v872 = vrot.slane %v867, %v871
    %v876 = vunpack.c.l.b16 %v861
    %v877 = vunpack.c.l.b16 %v862
    %vm878 = vcmask 1041409
    %v879 = vsel %vm878, %v877, %v876
    %v880 = vpack.c.b16 %v879, %v879
    %v885 = vunpack.c.l.b16 %v863
    %v886 = vunpack.c.l.b16 %v864
    %v887 = vunpack.c.l.b16 %v865
    %v888 = vunpack.c.l.b16 %v866
    %v889 = vpack.c.b16 %v886, %v885
    %v890 = vpack.c.b16 %v888, %v887
    %v894 = vsel %vm720, %v880, 0
    %896 = vmatprep.subr.bf16.mxu0 0
    %897 = vmatpush1.bf16.msra.mxu0 %v889
    %898 = vmatprep.subr.bf16.mxu0 0
    %899 = vmatpush1.bf16.msra.mxu0 %v890
    %900 = vmatprep.subr.bf16.mxu0 0
    %901 = vmatpush1.bf16.msra.mxu0 0
    %902 = vmatprep.subr.bf16.mxu0 0
    %903 = vmatpush1.bf16.msra.mxu0 0
    %904 = vmatprep.subr.bf16.mxu0 0
    %905 = vmatpush1.bf16.msra.mxu0 0
    %906 = vmatprep.subr.bf16.mxu0 0
    %907 = vmatpush1.bf16.msra.mxu0 0
    %908 = vmatprep.subr.bf16.mxu0 0
    %909 = vmatpush1.bf16.msra.mxu0 0
    %910 = vmatprep.subr.bf16.mxu0 0
    %911 = vmatpush1.bf16.msra.mxu0 0
    %912 = vmatprep.subr.bf16.mxu0 0
    %913 = vmatpush1.bf16.msra.mxu0 0
    %914 = vmatprep.subr.bf16.mxu0 0
    %915 = vmatpush1.bf16.msra.mxu0 0
    %916 = vmatprep.subr.bf16.mxu0 0
    %917 = vmatpush1.bf16.msra.mxu0 0
    %918 = vmatprep.subr.bf16.mxu0 0
    %919 = vmatpush1.bf16.msra.mxu0 0
    %920 = vmatprep.subr.bf16.mxu0 0
    %921 = vmatpush1.bf16.msra.mxu0 0
    %922 = vmatprep.subr.bf16.mxu0 0
    %923 = vmatpush1.bf16.msra.mxu0 0
    %924 = vmatprep.subr.bf16.mxu0 0
    %925 = vmatpush1.bf16.msra.mxu0 0
    %926 = vmatprep.subr.bf16.mxu0 0
    %927 = vmatpush1.bf16.msra.mxu0 0
    %928 = vmatprep.mubr.bf16.mxu0 0
    %929 = vmatmul.mubr.bf16.gmra.mrb[0].mxu0 %v894
    %v930 = vpop.f32.mrb[0].mxu0
    %v931 = vadd.f32 %v872, %v930
    %v932 = vpop.f32.mrb[0].mxu0
    %v933 = vpop.f32.mrb[0].mxu0
    %v934 = vpop.f32.mrb[0].mxu0
    %935 = vdwg.mxu0
    %vm936 = vcmask 74752
    %v937 = vsel %vm936, %v931, -inf
    %938 = vmax.xlane.f32.xlu0 %v937
    %v939 = vpop.xlane.xlu0 %938
    %v940 = vsub.f32 %v931, %v939
    %v941 = vmul.f32 %v940, 1.442695
    %v942 = vpow.pop %v941
    %v943 = vsel %vm936, %v942, 0.0
    %944 = vadd.xlane.f32.xlu0 %v943
    %v945 = vpop.xlane.xlu0 %944
    %v946 = vrcp.pop %v945
    %v947 = vmul.f32 %v942, %v946
    %948 = vst.msk [vmem:[#allocation2] sm:$0x3] %vm936, %v947
    // Predicated region
    $region18: #{pretrained_forward.1} parent=1 // pred_check
      _
    $region19: #{pretrained_forward.1} parent=1 // pred_check_branch
      %950 = sbr.rel (0) target = $region21
    $region20: #{pretrained_forward.1} parent=1 // pred_region
      %s952 = ssub.s32 32, 32
      %953 = vsyncadd [#allocation3], %s952
      %s955 = sshll.u32 [#allocation2], 4
      %s956 = int_to_ptr.vmem [resolvable:$true] %s955
      %958 = dma.vmem_to_hbm [thread:$0]  %s956, 32, %s4, [#allocation3]
    $region21: #{pretrained_forward.1} parent=1 // pred_fallthru
      _
    // Predicated region
    $region22: #{pretrained_forward.1} parent=1 // pred_check
      _
    $region23: #{pretrained_forward.1} parent=1 // pred_check_branch
      %960 = sbr.rel (0) target = $region25
    $region24: #{pretrained_forward.1} parent=1 // pred_region
      %961 = dma.done [#allocation3], 32
    $region25: #{pretrained_forward.1} parent=1 // pred_fallthru
      _
    %962 = vsyncpa [#allocation3], 1

</llo_original>
